<compile_context>
chip_gen: v5e
topology: v5e:2x2
jax: 0.10.0
libtpu: 0.0.40
codegen_flags: <defaults>
</compile_context>

<pallas_src>
import math
import functools

import jax
import jax.numpy as jnp
from jax import lax
from jax.experimental import pallas as pl
from jax.experimental.pallas import tpu as pltpu


def _round_up(v, m):
    return ((v + m - 1) // m) * m


@functools.lru_cache(maxsize=1)
def _vmem_capacity_bytes():
    try:
        return int(pltpu.get_tpu_info().vmem_capacity_bytes)
    except Exception:
        return 64 * 1024 * 1024  # conservative (v7x-sized) default


def _gen_tuned():
    """Per-generation tile maxima and scoped-VMEM budget."""
    if _vmem_capacity_bytes() >= 96 * 1024 * 1024:  # v5e / v6e (128 MiB VMEM)
        return dict(tm_max=512, tn_max=256, tk_max=1024,
                    vmem_limit=64 * 1024 * 1024)
    # v7x (64 MiB VMEM): keep conservative tiles / budget.
    return dict(tm_max=256, tn_max=256, tk_max=512,
                vmem_limit=32 * 1024 * 1024)


# ---------------------------------------------------------------------------
# Tiled Linear: y = x @ W^T + b  (torch nn.Linear semantics, W stored (N, K))
# ---------------------------------------------------------------------------
def _linear_kernel(x_ref, w_ref, b_ref, o_ref, acc_ref):
    k = pl.program_id(2)

    @pl.when(k == 0)
    def _():
        acc_ref[...] = jnp.zeros_like(acc_ref)

    # Contract x (tm, tk) with torch-layout W (tn, tk) directly; Mosaic lowers
    # this rhs-transposed contraction natively on the MXU (no per-tile
    # transposed copy of the weight is materialized).
    acc_ref[...] += lax.dot_general(
        x_ref[...], w_ref[...],
        dimension_numbers=(((1,), (1,)), ((), ())),
        preferred_element_type=jnp.float32)

    @pl.when(k == pl.num_programs(2) - 1)
    def _():
        o_ref[...] = (acc_ref[...] + b_ref[...].astype(jnp.float32)).astype(o_ref.dtype)


def linear_pallas(x, weight, bias):
    """torch.nn.Linear forward: x (..., K) @ weight(N, K).T + bias(N,)."""
    *lead, K = x.shape
    N = weight.shape[0]
    M = math.prod(lead) if lead else 1
    x2d = x.reshape(M, K)

    t = _gen_tuned()
    tm = min(t["tm_max"], _round_up(M, 8))
    tn = min(t["tn_max"], _round_up(N, 128))
    tk = min(t["tk_max"], _round_up(K, 128))
    Mp, Np, Kp = _round_up(M, tm), _round_up(N, tn), _round_up(K, tk)

    xp = x2d if (Mp == M and Kp == K) else jnp.pad(x2d, ((0, Mp - M), (0, Kp - K)))
    wp = weight if (Np == N and Kp == K) else jnp.pad(weight, ((0, Np - N), (0, Kp - K)))
    bp = (bias if Np == N else jnp.pad(bias, (0, Np - N))).reshape(1, Np)

    grid = (Mp // tm, Np // tn, Kp // tk)
    itemsize = jnp.dtype(x.dtype).itemsize
    bytes_accessed = itemsize * (Mp * Kp + Np * Kp + Mp * Np)

    out = pl.pallas_call(
        _linear_kernel,
        out_shape=jax.ShapeDtypeStruct((Mp, Np), x.dtype),
        grid_spec=pltpu.PrefetchScalarGridSpec(
            num_scalar_prefetch=0,
            grid=grid,
            in_specs=[
                pl.BlockSpec((tm, tk), lambda i, j, k: (i, k)),
                pl.BlockSpec((tn, tk), lambda i, j, k: (j, k)),
                pl.BlockSpec((1, tn), lambda i, j, k: (0, j)),
            ],
            out_specs=pl.BlockSpec((tm, tn), lambda i, j, k: (i, j)),
            scratch_shapes=[pltpu.VMEM((tm, tn), jnp.float32)],
        ),
        compiler_params=pltpu.CompilerParams(
            dimension_semantics=("parallel", "parallel", "arbitrary"),
            vmem_limit_bytes=t["vmem_limit"],
        ),
        cost_estimate=pl.CostEstimate(
            flops=2 * Mp * Np * Kp,
            transcendentals=0,
            bytes_accessed=int(bytes_accessed)),
    )(xp, wp, bp)

    return out[:M, :N].reshape(*lead, N)


# ---------------------------------------------------------------------------
# Scaled dot-product attention
#   grid = (batch, q-row tiles); all heads of one batch element per grid step.
# ---------------------------------------------------------------------------
def _sdpa_kernel(q_ref, k_ref, v_ref, m_ref, ctx_ref, att_ref, *,
                 n_heads, d_k, d_v, scale):
    # q_ref: (tq, H*Dk), k_ref: (S, H*Dk), v_ref: (S, H*Dv)
    # m_ref: (tq, S) int8 (nonzero = masked)
    # ctx_ref: (tq, H*Dv), att_ref: (H, tq, S)
    mask = m_ref[...].astype(jnp.int32) != 0
    neg = jnp.float32(-1e9)

    ctx_parts = []
    for h in range(n_heads):
        # Fold 1/sqrt(d_k) into q (tq*Dk multiplies instead of tq*S).
        q_h = q_ref[:, h * d_k:(h + 1) * d_k]
        q_h = q_h * jnp.asarray(scale, q_h.dtype)
        k_h = k_ref[:, h * d_k:(h + 1) * d_k]
        v_h = v_ref[:, h * d_v:(h + 1) * d_v]

        # scores = (q/sqrt(dk)) @ k^T, operands fed to the MXU in model dtype.
        scores = lax.dot_general(
            q_h, k_h, dimension_numbers=(((1,), (1,)), ((), ())),
            preferred_element_type=jnp.float32)
        scores = jnp.where(mask, neg, scores)

        # Numerically-stable softmax; reciprocal instead of a full S-wide divide.
        m_row = jnp.max(scores, axis=-1, keepdims=True)
        p = jnp.exp(scores - m_row)
        denom = jnp.sum(p, axis=-1, keepdims=True)
        atten = p * pl.reciprocal(denom, approx=False)

        att_ref[h] = atten.astype(att_ref.dtype)
        # TODO(synk): training-mode dropout on `atten` (eval-mode forward here).
        ctx_parts.append(
            jnp.dot(atten.astype(v_h.dtype), v_h,
                    preferred_element_type=jnp.float32))

    # Single lane-dense (tq, H*Dv) store; output already in (B, S, H*Dv) layout.
    ctx_ref[...] = jnp.concatenate(ctx_parts, axis=-1).astype(ctx_ref.dtype)


def _choose_q_tile(S):
    if S <= 256:
        return S
    for t in (256, 128, 64, 32, 16, 8):
        if S % t == 0:
            return t
    return S


def scaled_dot_product_attention_pallas(q, k, v, mask, *, n_heads, d_k, d_v):
    """q,k: (B, S, H*Dk), v: (B, S, H*Dv), mask: (B, S, S) int8 (nonzero=masked)."""
    B, S, HDk = q.shape
    HDv = v.shape[-1]
    scale = 1.0 / math.sqrt(d_k)
    tq = _choose_q_tile(S)
    t = _gen_tuned()

    kernel = functools.partial(
        _sdpa_kernel, n_heads=n_heads, d_k=d_k, d_v=d_v, scale=scale)

    itemsize = jnp.dtype(q.dtype).itemsize
    bytes_accessed = int(
        itemsize * (q.size + (S // tq) * (k.size + v.size)
                    + B * S * HDv + B * n_heads * S * S)
        + mask.size)

    ctx, att = pl.pallas_call(
        kernel,
        out_shape=(
            jax.ShapeDtypeStruct((B, S, HDv), q.dtype),
            jax.ShapeDtypeStruct((B, n_heads, S, S), q.dtype),
        ),
        grid_spec=pltpu.PrefetchScalarGridSpec(
            num_scalar_prefetch=0,
            grid=(B, S // tq),
            in_specs=[
                pl.BlockSpec((None, tq, HDk), lambda b, qi: (b, qi, 0)),
                pl.BlockSpec((None, S, HDk), lambda b, qi: (b, 0, 0)),
                pl.BlockSpec((None, S, HDv), lambda b, qi: (b, 0, 0)),
                pl.BlockSpec((None, tq, S), lambda b, qi: (b, qi, 0)),
            ],
            out_specs=(
                pl.BlockSpec((None, tq, HDv), lambda b, qi: (b, qi, 0)),
                pl.BlockSpec((None, n_heads, tq, S), lambda b, qi: (b, 0, qi, 0)),
            ),
        ),
        compiler_params=pltpu.CompilerParams(
            dimension_semantics=("parallel", "parallel"),
            vmem_limit_bytes=t["vmem_limit"],
        ),
        cost_estimate=pl.CostEstimate(
            flops=2 * B * n_heads * S * S * (d_k + d_v),
            transcendentals=B * n_heads * S * S,
            bytes_accessed=bytes_accessed),
    )(q, k, v, mask)
    return ctx, att


# ---------------------------------------------------------------------------
# MultiHeadAttention forward
# ---------------------------------------------------------------------------
def multi_head_attention_pallas(x, params, atten_mask=None):
    B, S, _ = x.shape
    H, Dk, Dv = params["n_heads"], params["d_k"], params["d_v"]

    # Fused QKV projection: x is read from HBM once for all three projections.
    w_qkv = params.get("w_qkv")
    b_qkv = params.get("b_qkv")
    if w_qkv is None:
        w_qkv = jnp.concatenate([params["w_q"], params["w_k"], params["w_v"]], axis=0)
        b_qkv = jnp.concatenate([params["b_q"], params["b_k"], params["b_v"]], axis=0)
    qkv = linear_pallas(x, w_qkv, b_qkv)           # (B, S, H*Dk + H*Dk + H*Dv)

    n_q = H * Dk
    n_v = H * Dv
    q = qkv[..., :n_q]                             # head h = cols [h*Dk, (h+1)*Dk)
    k = qkv[..., n_q:2 * n_q]
    v = qkv[..., 2 * n_q:2 * n_q + n_v]

    # Mask stays (B, S, S) int8 and is reused across heads inside the kernel
    # (no (B*H, S, S) int32 replication in HBM).
    if atten_mask is None:
        mask = jnp.zeros((B, S, S), jnp.int8)
    else:
        mask = jnp.broadcast_to(atten_mask, (B, S, S)).astype(jnp.int8)

    context, atten = scaled_dot_product_attention_pallas(
        q, k, v, mask, n_heads=H, d_k=Dk, d_v=Dv)
    # context is already (B, S, H*Dv) and atten already (B, H, S, S):
    # no host-side head-split / merge transposes.
    return context, atten


def init_mha_params(key, d_model, d_k, d_v, n_heads, dtype=jnp.float32):
    """Matches torch module: xavier_normal_ weights, zeros biases."""
    ks = jax.random.split(key, 3)

    def xavier(kk, out_f, in_f):
        std = math.sqrt(2.0 / (in_f + out_f))
        return std * jax.random.normal(kk, (out_f, in_f), dtype=dtype)

    p = dict(
        n_heads=n_heads, d_k=d_k, d_v=d_v,
        w_q=xavier(ks[0], d_k * n_heads, d_model),
        b_q=jnp.zeros((d_k * n_heads,), dtype),
        w_k=xavier(ks[1], d_k * n_heads, d_model),
        b_k=jnp.zeros((d_k * n_heads,), dtype),
        w_v=xavier(ks[2], d_v * n_heads, d_model),
        b_v=jnp.zeros((d_v * n_heads,), dtype),
    )
    # Pre-fused QKV weight/bias for the single-GEMM projection path.
    p["w_qkv"] = jnp.concatenate([p["w_q"], p["w_k"], p["w_v"]], axis=0)
    p["b_qkv"] = jnp.concatenate([p["b_q"], p["b_k"], p["b_v"]], axis=0)
    return p


# ---------------------------------------------------------------------------
# Pure-JAX reference for correctness check
# ---------------------------------------------------------------------------
def mha_reference(x, params, atten_mask):
    B, S, _ = x.shape
    H, Dk, Dv = params["n_heads"], params["d_k"], params["d_v"]
    q = x @ params["w_q"].T + params["b_q"]
    k = x @ params["w_k"].T + params["b_k"]
    v = x @ params["w_v"].T + params["b_v"]
    q = q.reshape(B, S, H, Dk).transpose(0, 2, 1, 3)
    k = k.reshape(B, S, H, Dk).transpose(0, 2, 1, 3)
    v = v.reshape(B, S, H, Dv).transpose(0, 2, 1, 3)
    scores = jnp.einsum("bhqd,bhkd->bhqk", q, k) / math.sqrt(Dk)
    if atten_mask is not None:
        m = jnp.broadcast_to(atten_mask[:, None, :, :], scores.shape)
        scores = jnp.where(m, -1e9, scores)
    atten = jax.nn.softmax(scores, axis=-1)
    ctx = jnp.einsum("bhqk,bhkd->bhqd", atten, v)
    ctx = ctx.transpose(0, 2, 1, 3).reshape(B, S, H * Dv)
    return ctx, atten


if __name__ == "__main__":
    key = jax.random.PRNGKey(0)
    k_x, k_p = jax.random.split(key)

    batch, seq, d_model, n_heads, d_k, d_v = 2, 8, 32, 4, 8, 8
    x = jax.random.normal(k_x, (batch, seq, d_model), dtype=jnp.float32)
    params = init_mha_params(k_p, d_model, d_k, d_v, n_heads)

    # Causal boolean mask (True = masked), same per batch element.
    idx = jnp.arange(seq)
    atten_mask = jnp.broadcast_to(
        (idx[None, :] > idx[:, None])[None], (batch, seq, seq))

    context, atten = multi_head_attention_pallas(x, params, atten_mask)
    jax.block_until_ready((context, atten))

    ctx_ref, att_ref = mha_reference(x, params, atten_mask)

    assert context.shape == (batch, seq, n_heads * d_v)
    assert atten.shape == (batch, n_heads, seq, seq)
    assert jnp.allclose(context, ctx_ref, atol=1e-4, rtol=1e-4)
    assert jnp.allclose(atten, att_ref, atol=1e-4, rtol=1e-4)

    print("KERNEL_OK")
</pallas_src>

<mosaic_0001>
module attributes {stable_mosaic.version = 11 : i64} {
  func.func @_linear_kernel(%arg0: i32, %arg1: i32, %arg2: i32, %arg3: memref<16x128xf32, #tpu.memory_space<vmem>>, %arg4: memref<128x128xf32, #tpu.memory_space<vmem>>, %arg5: memref<1x128xf32, #tpu.memory_space<vmem>>, %arg6: memref<16x128xf32, #tpu.memory_space<vmem>>, %arg7: memref<16x128xf32, #tpu.memory_space<vmem>>) attributes {dimension_semantics = [#tpu.dimension_semantics<parallel>, #tpu.dimension_semantics<parallel>, #tpu.dimension_semantics<arbitrary>], iteration_bounds = array<i64: 1, 1, 1>, scalar_prefetch = 0 : i64, scratch_operands = 1 : i64, tpu.core_type = #tpu.core_type<tc>, window_params = [{transform_indices = @transform_0, window_bounds = array<i64: 16, 128>}, {transform_indices = @transform_1, window_bounds = array<i64: 128, 128>}, {transform_indices = @transform_2, window_bounds = array<i64: 1, 128>}, {transform_indices = @transform_3, window_bounds = array<i64: 16, 128>}]} {
    %c0_i32 = arith.constant 0 : i32
    %0 = arith.cmpi eq, %arg2, %c0_i32 : i32
    %1 = arith.extui %0 : i1 to i32
    %c0_i32_0 = arith.constant 0 : i32
    %2 = arith.cmpi ne, %1, %c0_i32_0 : i32
    scf.if %2 {
      %cst_10 = arith.constant 0.000000e+00 : f32
      %12 = vector.broadcast %cst_10 : f32 to vector<16x128xf32>
      %c0_11 = arith.constant 0 : index
      %c0_12 = arith.constant 0 : index
      %13 = vector.load %arg7[%c0_11, %c0_12] : memref<16x128xf32, #tpu.memory_space<vmem>>, vector<16x128xf32>
      tpu.vector_store %arg7[%c0_11, %c0_12], %12 {strides = array<i32>} : memref<16x128xf32, #tpu.memory_space<vmem>>, vector<16x128xf32>,
    } else {
    }
    %c0 = arith.constant 0 : index
    %c0_1 = arith.constant 0 : index
    %3 = vector.load %arg7[%c0, %c0_1] : memref<16x128xf32, #tpu.memory_space<vmem>>, vector<16x128xf32>
    %c0_2 = arith.constant 0 : index
    %c0_3 = arith.constant 0 : index
    %4 = vector.load %arg3[%c0_2, %c0_3] : memref<16x128xf32, #tpu.memory_space<vmem>>, vector<16x128xf32>
    %c0_4 = arith.constant 0 : index
    %c0_5 = arith.constant 0 : index
    %5 = vector.load %arg4[%c0_4, %c0_5] : memref<128x128xf32, #tpu.memory_space<vmem>>, vector<128x128xf32>
    %cst = arith.constant dense<0.000000e+00> : vector<16x128xf32>
    %6 = tpu.matmul %4, %5, %cst {dimension_numbers = #tpu.dot_dimension_numbers<[1], [1], [0], [0], [0, 0, 1, 0], [], []>} : vector<16x128xf32>, vector<128x128xf32>, vector<16x128xf32> -> vector<16x128xf32>
    %7 = arith.addf %3, %6 : vector<16x128xf32>
    %c0_6 = arith.constant 0 : index
    %c0_7 = arith.constant 0 : index
    %8 = vector.load %arg7[%c0_6, %c0_7] : memref<16x128xf32, #tpu.memory_space<vmem>>, vector<16x128xf32>
    tpu.vector_store %arg7[%c0_6, %c0_7], %7 {strides = array<i32>} : memref<16x128xf32, #tpu.memory_space<vmem>>, vector<16x128xf32>,
    %c0_i32_8 = arith.constant 0 : i32
    %9 = arith.cmpi eq, %arg2, %c0_i32_8 : i32
    %10 = arith.extui %9 : i1 to i32
    %c0_i32_9 = arith.constant 0 : i32
    %11 = arith.cmpi ne, %10, %c0_i32_9 : i32
    scf.if %11 {
      %c0_10 = arith.constant 0 : index
      %c0_11 = arith.constant 0 : index
      %12 = vector.load %arg7[%c0_10, %c0_11] : memref<16x128xf32, #tpu.memory_space<vmem>>, vector<16x128xf32>
      %c0_12 = arith.constant 0 : index
      %c0_13 = arith.constant 0 : index
      %13 = vector.load %arg5[%c0_12, %c0_13] : memref<1x128xf32, #tpu.memory_space<vmem>>, vector<1x128xf32>
      %14 = vector.broadcast %13 : vector<1x128xf32> to vector<16x128xf32>
      %15 = arith.addf %12, %14 : vector<16x128xf32>
      %c0_14 = arith.constant 0 : index
      %c0_15 = arith.constant 0 : index
      %16 = vector.load %arg6[%c0_14, %c0_15] : memref<16x128xf32, #tpu.memory_space<vmem>>, vector<16x128xf32>
      tpu.vector_store %arg6[%c0_14, %c0_15], %15 {strides = array<i32>} : memref<16x128xf32, #tpu.memory_space<vmem>>, vector<16x128xf32>,
    } else {
    }
    return
  }
  func.func @transform_0(%arg0: i32, %arg1: i32, %arg2: i32) -> (i32, i32) {
    %c0_i32 = arith.constant 0 : i32
    return %arg0, %arg2 : i32, i32
  }
  func.func @transform_1(%arg0: i32, %arg1: i32, %arg2: i32) -> (i32, i32) {
    %c0_i32 = arith.constant 0 : i32
    return %arg1, %arg2 : i32, i32
  }
  func.func @transform_2(%arg0: i32, %arg1: i32, %arg2: i32) -> (i32, i32) {
    %c0_i32 = arith.constant 0 : i32
    %c0_i32_0 = arith.constant 0 : i32
    return %c0_i32, %arg1 : i32, i32
  }
  func.func @transform_3(%arg0: i32, %arg1: i32, %arg2: i32) -> (i32, i32) {
    %c0_i32 = arith.constant 0 : i32
    return %arg0, %arg1 : i32, i32
  }
}

</mosaic_0001>

<llo_original>
// kernel: tpu_custom_call.1
$region0: #{tpu_custom_call.1}
  #allocation0 [shape = 'u32[]', space=smem, size = 0x4, offset = 0x4, fixed_abs, tag = 'smem constant byte address 0x4 - core index']
  #allocation1 [shape = 'u32[72,128]{1,0:T(1,128)}', space=vmem, size = 0x9000, scoped, tag = 'internal scratch']
  #allocation2 [shape = 'f32[16,128]{1,0:T(8,128)}', space=vmem, size = 0x2000, scoped, tag = 'scratch operand']
  %s0 = inlined_call_operand.hbm [shape: f32[16,128], index: 0, kind: input, shape index: {}]
  %s1 = inlined_call_operand.hbm [shape: f32[128,128], index: 1, kind: input, shape index: {}]
  %s2 = inlined_call_operand.vmem [shape: f32[1,128], index: 2, kind: input, shape index: {}]
  %s3 = inlined_call_operand.hbm [shape: f32[16,128], index: 3, kind: output, shape index: {}]
  %s4 = sld [smem:[#allocation0]]
  $region38: #{tpu_custom_call.1} parent=0
    _
  %s6 = ssub.s32 1, %s4
  %s7 = scalar_select 0, %s6, %s4
  $region1: #{tpu_custom_call.1} parent=0
    #allocation3 [shape = 'u8[8192]{0}', space=vmem, size = 0x2000, scoped, tag = 'input window, operand 0, single buffered']
    #allocation4 [shape = 's32[1]{0}', space=sflag, size = 0x4, scoped, tag = 'scoped memory for tpu_custom_call.1']
    #allocation5 [shape = 's32[1]{0}', space=sflag, size = 0x4, scoped, tag = 'scoped memory for tpu_custom_call.1']
    #allocation6 [shape = 'u8[65536]{0}', space=vmem, size = 0x10000, scoped, tag = 'input window, operand 1, single buffered']
    #allocation7 [shape = 's32[1]{0}', space=sflag, size = 0x4, scoped, tag = 'scoped memory for tpu_custom_call.1']
    #allocation8 [shape = 'u8[8192]{0}', space=vmem, size = 0x2000, scoped, tag = 'output window, operand 0, single buffered']
    %8 = vsyncpa [#allocation4], 0
    %9 = vsyncpa [#allocation7], 0
    %10 = vsyncpa [#allocation5], 0
    // Predicated region
    $region2: #{tpu_custom_call.1} parent=1 // pred_check
      _
    $region3: #{tpu_custom_call.1} parent=1 // pred_check_branch
      %12 = sbr.rel (0) target = $region5
    $region4: #{tpu_custom_call.1} parent=1 // pred_region
      %14 = vsyncadd [#allocation4], 0
      %s15 = sshll.u32 %s0, 4
      %s16 = int_to_ptr.hbm [resolvable:$true] %s15
      %s17 = sshll.u32 [#allocation3], 4
      %s18 = int_to_ptr.vmem [resolvable:$true] %s17
      %23 = dma.hbm_to_vmem [thread:$0]  %s16, 256, %s18, [#allocation4], 128, 128, 8
    $region5: #{tpu_custom_call.1} parent=1 // pred_fallthru
      _
    // Predicated region
    $region6: #{tpu_custom_call.1} parent=1 // pred_check
      _
    $region7: #{tpu_custom_call.1} parent=1 // pred_check_branch
      %25 = sbr.rel (0) target = $region9
    $region8: #{tpu_custom_call.1} parent=1 // pred_region
      %27 = vsyncadd [#allocation7], 0
      %s28 = sshll.u32 %s1, 4
      %s29 = int_to_ptr.hbm [resolvable:$true] %s28
      %s30 = sshll.u32 [#allocation6], 4
      %s31 = int_to_ptr.vmem [resolvable:$true] %s30
      %36 = dma.hbm_to_vmem [thread:$0]  %s29, 2048, %s31, [#allocation7], 128, 128, 8
    $region9: #{tpu_custom_call.1} parent=1 // pred_fallthru
      _
    // Predicated region
    $region10: #{tpu_custom_call.1} parent=1 // pred_check
      _
    $region11: #{tpu_custom_call.1} parent=1 // pred_check_branch
      %38 = sbr.rel (0) target = $region13
    $region12: #{tpu_custom_call.1} parent=1 // pred_region
      _
    $region13: #{tpu_custom_call.1} parent=1 // pred_fallthru
      _
    // Predicated region
    $region14: #{tpu_custom_call.1} parent=1 // pred_check
      _
    $region15: #{tpu_custom_call.1} parent=1 // pred_check_branch
      %40 = sbr.rel (0) target = $region17
    $region16: #{tpu_custom_call.1} parent=1 // pred_region
      %42 = dma.done [#allocation4], 256
    $region17: #{tpu_custom_call.1} parent=1 // pred_fallthru
      _
    // Predicated region
    $region18: #{tpu_custom_call.1} parent=1 // pred_check
      _
    $region19: #{tpu_custom_call.1} parent=1 // pred_check_branch
      %44 = sbr.rel (0) target = $region21
    $region20: #{tpu_custom_call.1} parent=1 // pred_region
      %46 = dma.done [#allocation7], 2048
    $region21: #{tpu_custom_call.1} parent=1 // pred_fallthru
      _
    %p47 = scmp.eq.s32.totalorder 0, 0
    // Predicated region
    $region22: #{tpu_custom_call.1} parent=1 // pred_check
      %p48 = pneg %p47
    $region23: #{tpu_custom_call.1} parent=1 // pred_check_branch
      %50 = sbr.rel (%p48) target = $region25
    $region24: #{tpu_custom_call.1} parent=1 // pred_region
      %51 = vst [vmem:[#allocation2] sm:$0xff] 0.0
      %52 = vst [vmem:[#allocation2 + $0x8] sm:$0xff] 0.0
    $region25: #{tpu_custom_call.1} parent=1 // pred_fallthru
      _
    %v53 = vld [vmem:[#allocation2] sm:$0xff]
    %v54 = vld [vmem:[#allocation2 + $0x8] sm:$0xff]
    %v55 = vld [vmem:[#allocation3] sm:$0xff]
    %v56 = vld [vmem:[#allocation3 + $0x8] sm:$0xff]
    %v57 = vld [vmem:[#allocation6] sm:$0xff]
    %v58 = vld [vmem:[#allocation6 + $0x8] sm:$0xff]
    %v59 = vld [vmem:[#allocation6 + $0x10] sm:$0xff]
    %v60 = vld [vmem:[#allocation6 + $0x18] sm:$0xff]
    %v61 = vld [vmem:[#allocation6 + $0x20] sm:$0xff]
    %v62 = vld [vmem:[#allocation6 + $0x28] sm:$0xff]
    %v63 = vld [vmem:[#allocation6 + $0x30] sm:$0xff]
    %v64 = vld [vmem:[#allocation6 + $0x38] sm:$0xff]
    %v65 = vld [vmem:[#allocation6 + $0x40] sm:$0xff]
    %v66 = vld [vmem:[#allocation6 + $0x48] sm:$0xff]
    %v67 = vld [vmem:[#allocation6 + $0x50] sm:$0xff]
    %v68 = vld [vmem:[#allocation6 + $0x58] sm:$0xff]
    %v69 = vld [vmem:[#allocation6 + $0x60] sm:$0xff]
    %v70 = vld [vmem:[#allocation6 + $0x68] sm:$0xff]
    %v71 = vld [vmem:[#allocation6 + $0x70] sm:$0xff]
    %v72 = vld [vmem:[#allocation6 + $0x78] sm:$0xff]
    %73 = vmatpush.xpose.msra.mxu0 %v72
    %74 = vmatpush.xpose.msra.mxu0 %v71
    %75 = vmatpush.xpose.msra.mxu0 %v70
    %76 = vmatpush.xpose.msra.mxu0 %v69
    %77 = vmatpush.xpose.msra.mxu0 %v68
    %78 = vmatpush.xpose.msra.mxu0 %v67
    %79 = vmatpush.xpose.msra.mxu0 %v66
    %80 = vmatpush.xpose.msra.mxu0 %v65
    %81 = vmatpush.xpose.msra.mxu0 %v64
    %82 = vmatpush.xpose.msra.mxu0 %v63
    %83 = vmatpush.xpose.msra.mxu0 %v62
    %84 = vmatpush.xpose.msra.mxu0 %v61
    %85 = vmatpush.xpose.msra.mxu0 %v60
    %86 = vmatpush.xpose.msra.mxu0 %v59
    %87 = vmatpush.xpose.msra.mxu0 %v58
    %88 = vmatpush.xpose.msra.mxu0 %v57
    %89 = vmatmul.f32.gmra.mxu0 %v55
    %v90 = vpop.f32.mrf.mxu0
    %v91 = vadd.f32 0.0, %v90
    %92 = vmatmul.f32.gmra.mxu0 %v56
    %v93 = vpop.f32.mrf.mxu0
    %v94 = vadd.f32 0.0, %v93
    %95 = vdwg.mxu0
    %v96 = vadd.f32 %v53, %v91
    %v97 = vadd.f32 %v54, %v94
    %98 = vst [vmem:[#allocation2] sm:$0xff] %v96
    %99 = vst [vmem:[#allocation2 + $0x8] sm:$0xff] %v97
    // Predicated region
    $region26: #{tpu_custom_call.1} parent=1 // pred_check
      %p100 = pneg %p47
    $region27: #{tpu_custom_call.1} parent=1 // pred_check_branch
      %102 = sbr.rel (%p100) target = $region29
    $region28: #{tpu_custom_call.1} parent=1 // pred_region
      %v103 = vld [vmem:[#allocation2] sm:$0xff]
      %v104 = vld [vmem:[#allocation2 + $0x8] sm:$0xff]
      %v105 = vld [vmem:[%s2] sm:$0x1]
      %v107 = vperm.slane %v105, 0
      %v109 = vadd.f32 %v103, %v107
      %v110 = vadd.f32 %v104, %v107
      %111 = vst [vmem:[#allocation8] sm:$0xff] %v109
      %112 = vst [vmem:[#allocation8 + $0x8] sm:$0xff] %v110
    $region29: #{tpu_custom_call.1} parent=1 // pred_fallthru
      _
    // Predicated region
    $region30: #{tpu_custom_call.1} parent=1 // pred_check
      _
    $region31: #{tpu_custom_call.1} parent=1 // pred_check_branch
      %114 = sbr.rel (0) target = $region33
    $region32: #{tpu_custom_call.1} parent=1 // pred_region
      %116 = vsyncadd [#allocation5], 0
      %s117 = sshll.u32 [#allocation8], 4
      %s118 = int_to_ptr.vmem [resolvable:$true] %s117
      %s119 = sshll.u32 %s3, 4
      %s120 = int_to_ptr.hbm [resolvable:$true] %s119
      %125 = dma.vmem_to_hbm [thread:$0]  %s118, 256, %s120, [#allocation5], 128, 128, 8
    $region33: #{tpu_custom_call.1} parent=1 // pred_fallthru
      _
    // Predicated region
    $region34: #{tpu_custom_call.1} parent=1 // pred_check
      _
    $region35: #{tpu_custom_call.1} parent=1 // pred_check_branch
      %127 = sbr.rel (0) target = $region37
    $region36: #{tpu_custom_call.1} parent=1 // pred_region
      %129 = dma.done [#allocation5], 256
    $region37: #{tpu_custom_call.1} parent=1 // pred_fallthru
      _
    %130 = vsyncpa [#allocation4], 1
    %131 = vsyncpa [#allocation7], 1
    %132 = vsyncpa [#allocation5], 1

</llo_original>
